<compile_context>
chip_gen: v7x
topology: tpu7x:2x2x1
jax: 0.10.0
libtpu: 0.0.40
codegen_flags: <defaults>
</compile_context>

<pallas_src>
import functools
import numpy as np
import jax
import jax.numpy as jnp
from jax import lax
from jax.experimental import pallas as pl
from jax.experimental.pallas import tpu as pltpu


# ----------------------------- Pallas kernel ------------------------------ #
def _conv_bn_relu_kernel(x_ref, w_ref, o_ref):
    # x_ref : (row_block, K_pad)   im2row'ed input rows (bf16); last real column
    #                              is the ones column that carries the BN shift.
    # w_ref : (K_pad, W*C_out)     BN-folded, width-banded weights + shift row (bf16).
    # o_ref : (row_block, W*C_out) lane-dense f32 output slab.
    acc = jnp.dot(x_ref[...], w_ref[...], preferred_element_type=jnp.float32)
    o_ref[...] = jnp.maximum(acc, 0.0)          # ReLU only; BN shift is in the matmul


# ----------------------- one-time weight preparation ----------------------- #
def prepare_weights(params, W, mxu_dtype=jnp.bfloat16):
    """Fold BN into the conv weights and band the width taps.

    Runs ONCE per parameter set (host-side NumPy), off the per-call hot path.
    Returns the (K_pad, W*C_out) matmul weight in the MXU operand dtype.
    NOTE: bakes in BN scale/shift -> rebuild if BN stats/params change.
    """
    w = np.asarray(params["w"], np.float32)          # (kh, kw, C_in, C_out) HWIO
    scale = np.asarray(params["scale"], np.float32)  # (C_out,)
    shift = np.asarray(params["shift"], np.float32)  # (C_out,)
    kh, kw, C_in, C_out = w.shape
    Wp = W + kw - 1

    # TODO(synk): at production W, band only within a W tile (or band dx only)
    # so the weight stays O(W) not O(W^2) and fits v7x's 64 MiB VMEM.

    # Fold BN scale.
    w_eff = w * scale.reshape(1, 1, 1, C_out)

    # Band width taps: w_band[dy, p*C_in+ci, x*C_out+co] = w_eff[dy, p-x, ci, co]
    # for 0 <= p-x < kw, else 0.  One matmul then covers all dy/dx/ci taps.
    sel = np.zeros((kw, Wp, W), np.float32)
    for dx in range(kw):
        sel[dx, np.arange(W) + dx, np.arange(W)] = 1.0
    w_band = np.einsum("dpx,kdio->kpixo", sel, w_eff)
    w_band = w_band.reshape(kh * Wp * C_in, W * C_out)

    # Fold BN shift as one extra K row (paired with a ones column in the x slab).
    shift_row = np.tile(shift, W).reshape(1, W * C_out)
    w_full = np.concatenate([w_band, shift_row], axis=0)     # (kh*Wp*C_in + 1, W*C_out)

    # Pad K to a multiple of 8 (sublane alignment of the weight slab).
    K = w_full.shape[0]
    K_pad = ((K + 7) // 8) * 8
    w_full = np.pad(w_full, ((0, K_pad - K), (0, 0)))
    return jnp.asarray(w_full, mxu_dtype)


# ------------------------------- forward ----------------------------------- #
def basic_residual_1x(x_nchw, w_mat, *, row_block=None):
    """conv3x3(pad=1, no bias) + folded BN + ReLU via one Pallas matmul."""
    N, C_in, H, W = x_nchw.shape
    kh = kw = 3
    Hp, Wp = H + kh - 1, W + kw - 1
    K_pad, WC = w_mat.shape
    C_out = WC // W
    K = kh * Wp * C_in + 1
    NH = N * H

    # NCHW -> NHWC, zero-pad spatially, stack the kh dy-shifted windows along K
    # (dy-major, matching the weight banding), append the ones column for the
    # BN shift, pad K, cast to the MXU operand dtype.
    x = jnp.transpose(x_nchw, (0, 2, 3, 1))
    xpad = jnp.pad(x, ((0, 0), (1, 1), (1, 1), (0, 0)))
    wins = [xpad[:, dy:dy + H].reshape(NH, Wp * C_in) for dy in range(kh)]
    ones = jnp.ones((NH, 1), xpad.dtype)
    xslab = jnp.concatenate(wins + [ones], axis=-1)
    xslab = jnp.pad(xslab, ((0, 0), (0, K_pad - K))).astype(w_mat.dtype)

    # Row-blocked grid: 1 step at toy size; set row_block = NH // 2 (multiple of
    # 8) to shard rows across v7x's two TensorCores at production sizes, and
    # keep row_block >= 128/256 so the MXU M dimension is filled.
    if row_block is None:
        row_block = NH
    assert NH % row_block == 0 and row_block % 8 == 0
    grid = (NH // row_block,)

    out2d = pl.pallas_call(
        _conv_bn_relu_kernel,
        out_shape=jax.ShapeDtypeStruct((NH, WC), jnp.float32),
        grid=grid,
        in_specs=[
            pl.BlockSpec((row_block, K_pad), lambda i: (i, 0)),
            pl.BlockSpec((K_pad, WC), lambda i: (0, 0)),
        ],
        out_specs=pl.BlockSpec((row_block, WC), lambda i: (i, 0)),
        compiler_params=pltpu.CompilerParams(
            dimension_semantics=("parallel",),
            vmem_limit_bytes=8 * 1024 * 1024,
        ),
    )(xslab, w_mat)

    # (N*H, W*C_out) -> NCHW (cheap wrapper-side layout plumbing).
    out = out2d.reshape(N, H, W, C_out)
    return jnp.transpose(out, (0, 3, 1, 2))


# --------------------------- pure-JAX reference ---------------------------- #
def _reference(x_nchw, params):
    w, scale, shift = params["w"], params["scale"], params["shift"]
    x = jnp.transpose(x_nchw, (0, 2, 3, 1)).astype(jnp.float32)
    y = lax.conv_general_dilated(
        x, w, window_strides=(1, 1), padding=[(1, 1), (1, 1)],
        dimension_numbers=("NHWC", "HWIO", "NHWC"))
    y = jnp.maximum(y * scale + shift, 0.0)
    return jnp.transpose(y, (0, 3, 1, 2))


# ---------------------------------- main ----------------------------------- #
def _make_params(key, C_in, C_out, eps=1e-5):
    ks = jax.random.split(key, 5)
    w = 0.1 * jax.random.normal(ks[0], (3, 3, C_in, C_out), jnp.float32)   # HWIO
    gamma = jax.random.uniform(ks[1], (C_out,), jnp.float32, 0.5, 1.5)
    beta = 0.1 * jax.random.normal(ks[2], (C_out,), jnp.float32)
    mean = 0.1 * jax.random.normal(ks[3], (C_out,), jnp.float32)
    var = jax.random.uniform(ks[4], (C_out,), jnp.float32, 0.5, 1.5)
    scale = gamma / jnp.sqrt(var + eps)
    shift = beta - mean * scale
    return {"w": w, "scale": scale, "shift": shift}


if __name__ == "__main__":
    key = jax.random.PRNGKey(0)
    kx, kp = jax.random.split(key)

    N, C_in, C_out, H, W = 2, 4, 8, 16, 16
    x = jax.random.normal(kx, (N, C_in, H, W), jnp.float32)
    params = _make_params(kp, C_in, C_out)

    # One-time (per parameter set) host-side weight folding/banding.
    w_mat = prepare_weights(params, W)

    forward = jax.jit(basic_residual_1x, static_argnames=("row_block",))
    out = jax.block_until_ready(forward(x, w_mat))

    ref = jax.block_until_ready(_reference(x, params))
    # bf16 MXU operands -> loosened tolerance vs the f32 reference.
    np.testing.assert_allclose(np.asarray(out), np.asarray(ref), rtol=5e-2, atol=5e-2)
    assert out.shape == (N, C_out, H, W)
    print("KERNEL_OK")
</pallas_src>

<mosaic_0001>
module attributes {stable_mosaic.version = 11 : i64} {
  func.func @_conv_bn_relu_kernel(%arg0: i32, %arg1: memref<32x224xbf16, #tpu.memory_space<vmem>>, %arg2: memref<224x128xbf16, #tpu.memory_space<vmem>>, %arg3: memref<32x128xf32, #tpu.memory_space<vmem>>) attributes {dimension_semantics = [#tpu.dimension_semantics<parallel>], iteration_bounds = array<i64: 1>, scalar_prefetch = 0 : i64, scratch_operands = 0 : i64, tpu.core_type = #tpu.core_type<tc>, window_params = [{transform_indices = @transform_0, window_bounds = array<i64: 32, 224>}, {pipeline_mode = #tpu.pipeline_mode<synchronous>, transform_indices = @transform_1, window_bounds = array<i64: 224, 128>}, {transform_indices = @transform_2, window_bounds = array<i64: 32, 128>}]} {
    %c0 = arith.constant 0 : index
    %c0_0 = arith.constant 0 : index
    %0 = vector.load %arg1[%c0, %c0_0] : memref<32x224xbf16, #tpu.memory_space<vmem>>, vector<32x224xbf16>
    %c0_1 = arith.constant 0 : index
    %c0_2 = arith.constant 0 : index
    %1 = vector.load %arg2[%c0_1, %c0_2] : memref<224x128xbf16, #tpu.memory_space<vmem>>, vector<224x128xbf16>
    %cst = arith.constant dense<0.000000e+00> : vector<32x128xf32>
    %2 = tpu.matmul %0, %1, %cst {dimension_numbers = #tpu.dot_dimension_numbers<[1], [0], [0], [1], [0, 0, 1, 1], [], []>} : vector<32x224xbf16>, vector<224x128xbf16>, vector<32x128xf32> -> vector<32x128xf32>
    %cst_3 = arith.constant 0.000000e+00 : f32
    %3 = vector.broadcast %cst_3 : f32 to vector<32x128xf32>
    %4 = arith.maximumf %2, %3 : vector<32x128xf32>
    %c0_4 = arith.constant 0 : index
    %c0_5 = arith.constant 0 : index
    %5 = vector.load %arg3[%c0_4, %c0_5] : memref<32x128xf32, #tpu.memory_space<vmem>>, vector<32x128xf32>
    tpu.vector_store %arg3[%c0_4, %c0_5], %4 {strides = array<i32>} : memref<32x128xf32, #tpu.memory_space<vmem>>, vector<32x128xf32>,
    return
  }
  func.func @transform_0(%arg0: i32) -> (i32, i32) {
    %c0_i32 = arith.constant 0 : i32
    %c0_i32_0 = arith.constant 0 : i32
    return %arg0, %c0_i32 : i32, i32
  }
  func.func @transform_1(%arg0: i32) -> (i32, i32) {
    %c0_i32 = arith.constant 0 : i32
    %c0_i32_0 = arith.constant 0 : i32
    %c0_i32_1 = arith.constant 0 : i32
    return %c0_i32, %c0_i32_0 : i32, i32
  }
  func.func @transform_2(%arg0: i32) -> (i32, i32) {
    %c0_i32 = arith.constant 0 : i32
    %c0_i32_0 = arith.constant 0 : i32
    return %arg0, %c0_i32 : i32, i32
  }
}

</mosaic_0001>

<llo_original>
// kernel: basic_residual_1x.1
$region0: #{basic_residual_1x.1}
  #allocation0 [shape = 'u32[]', space=smem, size = 0x4, offset = 0x4, fixed_abs, tag = 'smem constant byte address 0x4 - core index']
  #allocation1 [shape = 'u32[144,128]{1,0:T(1,128)}', space=vmem, size = 0x12000, scoped, tag = 'internal scratch']
  %s0 = inlined_call_operand.vmem [shape: bf16[32,224], index: 0, kind: input, shape index: {}]
  %s1 = inlined_call_operand.vmem [shape: bf16[224,128], index: 1, kind: input, shape index: {}]
  %s2 = inlined_call_operand.vmem [shape: f32[32,128], index: 2, kind: output, shape index: {}]
  %s3 = sld [smem:[#allocation0]]
  $region18: #{basic_residual_1x.1} parent=0
    _
  %s5 = ssub.s32 1, %s3
  %s6 = scalar_select 0, %s5, %s3
  // Predicated region
  $region2: #{basic_residual_1x.1} parent=0 // pred_check
    _
  $region3: #{basic_residual_1x.1} parent=0 // pred_check_branch
    %8 = sbr.rel (0) target = $region5
  $region4: #{basic_residual_1x.1} parent=0 // pred_region
    _
  $region5: #{basic_residual_1x.1} parent=0 // pred_fallthru
    _
  // Predicated region
  $region6: #{basic_residual_1x.1} parent=0 // pred_check
    _
  $region7: #{basic_residual_1x.1} parent=0 // pred_check_branch
    %10 = sbr.rel (0) target = $region9
  $region8: #{basic_residual_1x.1} parent=0 // pred_region
    _
  $region9: #{basic_residual_1x.1} parent=0 // pred_fallthru
    _
  %v12 = vld [vmem:[%s0] sm:$0xff]
  %v13 = vld [vmem:[%s0 + $0x8] sm:$0xff]
  %v14 = vld [vmem:[%s0 + $0x10] sm:$0xff]
  %v15 = vld [vmem:[%s0 + $0x18] sm:$0xff]
  %v16 = vld [vmem:[%s1] sm:$0xf]
  %v17 = vld [vmem:[%s1 + $0x4] sm:$0xf]
  %v18 = vld [vmem:[%s1 + $0x8] sm:$0xf]
  %v19 = vld [vmem:[%s1 + $0xc] sm:$0xf]
  %v20 = vld [vmem:[%s1 + $0x10] sm:$0xf]
  %v21 = vld [vmem:[%s1 + $0x14] sm:$0xf]
  %v22 = vld [vmem:[%s1 + $0x18] sm:$0xf]
  %v23 = vld [vmem:[%s1 + $0x1c] sm:$0xf]
  %v24 = vld [vmem:[%s1 + $0x20] sm:$0xf]
  %v25 = vld [vmem:[%s1 + $0x24] sm:$0xf]
  %v26 = vld [vmem:[%s1 + $0x28] sm:$0xf]
  %v27 = vld [vmem:[%s1 + $0x2c] sm:$0xf]
  %v28 = vld [vmem:[%s1 + $0x30] sm:$0xf]
  %v29 = vld [vmem:[%s1 + $0x34] sm:$0xf]
  %v30 = vld [vmem:[%s1 + $0x38] sm:$0xf]
  %v31 = vld [vmem:[%s1 + $0x3c] sm:$0xf]
  %v32 = vld [vmem:[%s1 + $0x40] sm:$0xf]
  %v33 = vld [vmem:[%s1 + $0x44] sm:$0xf]
  %v34 = vld [vmem:[%s1 + $0x48] sm:$0xf]
  %v35 = vld [vmem:[%s1 + $0x4c] sm:$0xf]
  %v36 = vld [vmem:[%s1 + $0x50] sm:$0xf]
  %v37 = vld [vmem:[%s1 + $0x54] sm:$0xf]
  %v38 = vld [vmem:[%s1 + $0x58] sm:$0xf]
  %v39 = vld [vmem:[%s1 + $0x5c] sm:$0xf]
  %v40 = vld [vmem:[%s1 + $0x60] sm:$0xf]
  %v41 = vld [vmem:[%s1 + $0x64] sm:$0xf]
  %v42 = vld [vmem:[%s1 + $0x68] sm:$0xf]
  %v43 = vld [vmem:[%s1 + $0x6c] sm:$0xf]
  %v48 = vunpack.c.l.b16 %v12
  %v49 = vunpack.c.h.b16 %v12
  %v50 = vunpack.c.l.b16 %v13
  %v51 = vunpack.c.h.b16 %v13
  %v52 = vunpack.c.l.b16 %v14
  %v53 = vunpack.c.h.b16 %v14
  %v54 = vunpack.c.l.b16 %v15
  %v55 = vunpack.c.h.b16 %v15
  %v56 = vpack.c.b16 %v50, %v48
  %v57 = vpack.c.b16 %v51, %v49
  %v58 = vpack.c.b16 %v54, %v52
  %v59 = vpack.c.b16 %v55, %v53
  %v90 = vunpack.c.l.b16 %v16
  %v91 = vunpack.c.l.b16 %v17
  %v92 = vunpack.c.l.b16 %v18
  %v93 = vunpack.c.l.b16 %v19
  %v94 = vunpack.c.l.b16 %v20
  %v95 = vunpack.c.l.b16 %v21
  %v96 = vunpack.c.l.b16 %v22
  %v97 = vunpack.c.l.b16 %v23
  %v98 = vunpack.c.l.b16 %v24
  %v99 = vunpack.c.l.b16 %v25
  %v100 = vunpack.c.l.b16 %v26
  %v101 = vunpack.c.l.b16 %v27
  %v102 = vunpack.c.l.b16 %v28
  %v103 = vunpack.c.l.b16 %v29
  %v104 = vunpack.c.l.b16 %v30
  %v105 = vunpack.c.l.b16 %v31
  %v106 = vunpack.c.l.b16 %v32
  %v107 = vunpack.c.l.b16 %v33
  %v108 = vunpack.c.l.b16 %v34
  %v109 = vunpack.c.l.b16 %v35
  %v110 = vunpack.c.l.b16 %v36
  %v111 = vunpack.c.l.b16 %v37
  %v112 = vunpack.c.l.b16 %v38
  %v113 = vunpack.c.l.b16 %v39
  %v114 = vunpack.c.l.b16 %v40
  %v115 = vunpack.c.l.b16 %v41
  %v116 = vunpack.c.l.b16 %v42
  %v117 = vunpack.c.l.b16 %v43
  %v118 = vpack.c.b16 %v91, %v90
  %v119 = vpack.c.b16 %v93, %v92
  %v120 = vpack.c.b16 %v95, %v94
  %v121 = vpack.c.b16 %v97, %v96
  %v122 = vpack.c.b16 %v99, %v98
  %v123 = vpack.c.b16 %v101, %v100
  %v124 = vpack.c.b16 %v103, %v102
  %v125 = vpack.c.b16 %v105, %v104
  %v126 = vpack.c.b16 %v107, %v106
  %v127 = vpack.c.b16 %v109, %v108
  %v128 = vpack.c.b16 %v111, %v110
  %v129 = vpack.c.b16 %v113, %v112
  %v130 = vpack.c.b16 %v115, %v114
  %v131 = vpack.c.b16 %v117, %v116
  %vm146 = vcmask 785408
  %v148 = vsel %vm146, %v57, 0
  %v151 = vsel %vm146, %v59, 0
  %153 = vmatprep.subr.bf16.mxu0 0
  %154 = vmatpush1.bf16.msra.mxu0 %v118
  %155 = vmatprep.subr.bf16.mxu0 0
  %156 = vmatpush1.bf16.msra.mxu0 %v119
  %157 = vmatprep.subr.bf16.mxu0 0
  %158 = vmatpush1.bf16.msra.mxu0 %v120
  %159 = vmatprep.subr.bf16.mxu0 0
  %160 = vmatpush1.bf16.msra.mxu0 %v121
  %161 = vmatprep.subr.bf16.mxu0 0
  %162 = vmatpush1.bf16.msra.mxu0 %v122
  %163 = vmatprep.subr.bf16.mxu0 0
  %164 = vmatpush1.bf16.msra.mxu0 %v123
  %165 = vmatprep.subr.bf16.mxu0 0
  %166 = vmatpush1.bf16.msra.mxu0 %v124
  %167 = vmatprep.subr.bf16.mxu0 0
  %168 = vmatpush1.bf16.msra.mxu0 %v125
  %169 = vmatprep.subr.bf16.mxu0 0
  %170 = vmatpush1.bf16.msra.mxu0 %v126
  %171 = vmatprep.subr.bf16.mxu0 0
  %172 = vmatpush1.bf16.msra.mxu0 %v127
  %173 = vmatprep.subr.bf16.mxu0 0
  %174 = vmatpush1.bf16.msra.mxu0 %v128
  %175 = vmatprep.subr.bf16.mxu0 0
  %176 = vmatpush1.bf16.msra.mxu0 %v129
  %177 = vmatprep.subr.bf16.mxu0 0
  %178 = vmatpush1.bf16.msra.mxu0 %v130
  %179 = vmatprep.subr.bf16.mxu0 0
  %180 = vmatpush1.bf16.msra.mxu0 %v131
  %181 = vmatprep.subr.bf16.mxu0 0
  %182 = vmatpush1.bf16.msra.mxu0 0
  %183 = vmatprep.subr.bf16.mxu0 0
  %184 = vmatpush1.bf16.msra.mxu0 0
  %185 = vmatprep.mubr.bf16.mxu0 %v148
  %186 = vmatmul.mubr.bf16.gmra.mrb[0].mxu0 %v56
  %v187 = vpop.f32.mrb[0].mxu0
  %v188 = vadd.f32 0.0, %v187
  %v189 = vpop.f32.mrb[0].mxu0
  %v190 = vpop.f32.mrb[0].mxu0
  %v191 = vadd.f32 0.0, %v190
  %v192 = vpop.f32.mrb[0].mxu0
  %193 = vmatprep.mubr.bf16.mxu0 %v151
  %194 = vmatmul.mubr.bf16.gmra.mrb[0].mxu0 %v58
  %v195 = vpop.f32.mrb[0].mxu0
  %v196 = vadd.f32 0.0, %v195
  %v197 = vpop.f32.mrb[0].mxu0
  %v198 = vpop.f32.mrb[0].mxu0
  %v199 = vadd.f32 0.0, %v198
  %v200 = vpop.f32.mrb[0].mxu0
  %201 = vdwg.mxu0
  %v202 = vmax.f32 %v188, 0.0
  %v203 = vmax.f32 %v191, 0.0
  %v204 = vmax.f32 %v196, 0.0
  %v205 = vmax.f32 %v199, 0.0
  %206 = vst [vmem:[%s2] sm:$0xff] %v202
  %207 = vst [vmem:[%s2 + $0x8] sm:$0xff] %v203
  %208 = vst [vmem:[%s2 + $0x10] sm:$0xff] %v204
  %209 = vst [vmem:[%s2 + $0x18] sm:$0xff] %v205
  // Predicated region
  $region10: #{basic_residual_1x.1} parent=0 // pred_check
    _
  $region11: #{basic_residual_1x.1} parent=0 // pred_check_branch
    %211 = sbr.rel (0) target = $region13
  $region12: #{basic_residual_1x.1} parent=0 // pred_region
    _
  $region13: #{basic_residual_1x.1} parent=0 // pred_fallthru
    _
  // Predicated region
  $region14: #{basic_residual_1x.1} parent=0 // pred_check
    _
  $region15: #{basic_residual_1x.1} parent=0 // pred_check_branch
    %213 = sbr.rel (0) target = $region17
  $region16: #{basic_residual_1x.1} parent=0 // pred_region
    _
  $region17: #{basic_residual_1x.1} parent=0 // pred_fallthru
    _

</llo_original>
